<compile_context>
chip_gen: v5e
topology: v5e:2x2
jax: 0.10.0
libtpu: 0.0.40
codegen_flags: <defaults>
</compile_context>

<pallas_src>
import functools
import math

import jax
import jax.numpy as jnp
from jax.experimental import pallas as pl
from jax.experimental.pallas import tpu as pltpu


def _cdiv(a: int, b: int) -> int:
    return -(-a // b)


def _round_up(x: int, m: int) -> int:
    return _cdiv(x, m) * m


def _pad2d(a, rows: int, cols: int):
    r, c = a.shape
    if r == rows and c == cols:
        return a
    return jnp.pad(a, ((0, rows - r), (0, cols - c)))


def _ffn_kernel(x_ref, w1_ref, b1_ref, w2_ref, b2_ref, o_ref, acc_ref, *, mxu_dtype):
    """One (row-tile, d_ff-chunk) grid step.

    x_ref  : (TM, Dm)      input row tile
    w1_ref : (Dm, TK)      d_ff chunk of fc1 weight
    b1_ref : (1, TK)       d_ff chunk of fc1 bias
    w2_ref : (TK, Dm)      d_ff chunk of fc2 weight
    w2_ref : (1, Dm)       fc2 bias (same block every step)
    o_ref  : (TM, Dm)      output row tile (written on last chunk only)
    acc_ref: (TM, Dm) f32  accumulator, resident across the d_ff axis
    """
    k = pl.program_id(1)

    @pl.when(k == 0)
    def _init():
        acc_ref[...] = jnp.zeros_like(acc_ref)

    # fc1 chunk + bias + ReLU.  Applying b1/ReLU per chunk is exact: each d_ff
    # chunk of h depends only on that chunk's W1 columns / b1 entries.
    x = x_ref[...].astype(mxu_dtype)
    h = jnp.dot(x, w1_ref[...].astype(mxu_dtype),
                preferred_element_type=jnp.float32)
    h = jnp.maximum(h + b1_ref[...].astype(jnp.float32), 0.0)

    # Partial fc2: accumulate this d_ff chunk's contribution in f32.
    acc_ref[...] += jnp.dot(h.astype(mxu_dtype), w2_ref[...].astype(mxu_dtype),
                            preferred_element_type=jnp.float32)

    # Finalize once per row tile: b2 add + cast + lane-dense store.
    @pl.when(k == pl.num_programs(1) - 1)
    def _finalize():
        o_ref[...] = (acc_ref[...] + b2_ref[...].astype(jnp.float32)).astype(o_ref.dtype)


def _vmem_budget_bytes() -> int:
    """Generation-aware VMEM budget: 75% of physical, capped at 100 MiB."""
    phys = 64 * 1024 * 1024  # conservative fallback (v7x per-TC capacity)
    try:
        info = pltpu.get_tpu_info()
        for attr in ("vmem_capacity_bytes", "vmem_size_bytes", "vmem_bytes"):
            cap = getattr(info, attr, None)
            if cap:
                phys = int(cap)
                break
    except Exception:
        pass
    return min(phys * 3 // 4, 100 * 1024 * 1024)


def _estimate_vmem(tm: int, tk: int, dm: int, x_it: int, w_it: int, out_it: int) -> int:
    return (2 * tm * dm * x_it          # x tile (double-buffered)
            + 2 * tm * dm * out_it      # out tile (double-buffered)
            + 2 * dm * tk * w_it        # W1 chunk (double-buffered)
            + 2 * tk * dm * w_it        # W2 chunk (double-buffered)
            + 2 * tk * 4 + 2 * dm * 4   # bias blocks
            + tm * dm * 4               # f32 accumulator scratch
            + tm * tk * 4)              # headroom for the (TM, TK) f32 intermediate


def position_wise_feed_forward(x, w1, b1, w2, b2, *,
                               block_rows: int = 1024,
                               block_ff: int = 2048,
                               mxu_dtype=None):
    """x: (..., d_model); w1: (d_model, d_ff); b1: (d_ff,);
    w2: (d_ff, d_model); b2: (d_model,).  Returns fc2(relu(fc1(x)))."""
    d_model = x.shape[-1]
    d_ff = w1.shape[-1]
    assert w1.shape == (d_model, d_ff)
    assert w2.shape == (d_ff, d_model)
    assert b1.shape == (d_ff,) and b2.shape == (d_model,)

    if mxu_dtype is None:
        # bf16 is MXU-native on v5e/v6e/v7x; accumulation stays f32.
        mxu_dtype = jnp.bfloat16
    mxu_dtype = jnp.dtype(mxu_dtype)

    lead_shape = x.shape[:-1]
    x2 = x.reshape(-1, d_model)          # (M, d_model), free row-major reshape
    m_rows = x2.shape[0]

    # ---------------- tile-size selection ----------------
    x_it, w_it, out_it = x.dtype.itemsize, w1.dtype.itemsize, x.dtype.itemsize
    row_align = 8 if x_it >= 4 else 16   # native (8,128) f32 / (16,128) bf16 tiles
    dm_pad = _round_up(d_model, 128)     # lane-dense minor dim everywhere

    # Balanced row tiles instead of padding M up to a full block_rows multiple.
    n_row_tiles = max(1, _cdiv(m_rows, block_rows))
    tm = _round_up(_cdiv(m_rows, n_row_tiles), row_align)

    # d_ff chunk: multiple of 128 (256 by default via block_ff) for MXU alignment.
    tk = max(128, min(_round_up(d_ff, 128), _round_up(block_ff, 128)))

    budget = _vmem_budget_bytes()
    # Shrink the d_ff chunk first (never the matmul M / output-N dims), then rows.
    while _estimate_vmem(tm, tk, dm_pad, x_it, w_it, out_it) > budget:
        if tk > 128:
            tk = max(128, _round_up(tk // 2, 128))
        elif tm > row_align:
            tm = max(row_align, _round_up(tm // 2, row_align))
        else:
            break

    m_pad = _round_up(m_rows, tm)
    dff_pad = _round_up(d_ff, tk)
    n_k = dff_pad // tk

    # ---------------- zero-pad operands (exact: pads contribute zero) ----------------
    x2p = _pad2d(x2, m_pad, dm_pad)
    w1p = _pad2d(w1, dm_pad, dff_pad)
    w2p = _pad2d(w2, dff_pad, dm_pad)
    b1p = _pad2d(b1.reshape(1, d_ff), 1, dff_pad)
    b2p = _pad2d(b2.reshape(1, d_model), 1, dm_pad)

    kernel = functools.partial(_ffn_kernel, mxu_dtype=mxu_dtype)

    out = pl.pallas_call(
        kernel,
        out_shape=jax.ShapeDtypeStruct((m_pad, dm_pad), x.dtype),
        grid_spec=pltpu.PrefetchScalarGridSpec(
            num_scalar_prefetch=0,
            grid=(m_pad // tm, n_k),                 # rows parallel, d_ff chunks last
            in_specs=[
                pl.BlockSpec((tm, dm_pad), lambda i, k: (i, 0)),   # x row tile
                pl.BlockSpec((dm_pad, tk), lambda i, k: (0, k)),   # W1 chunk
                pl.BlockSpec((1, tk), lambda i, k: (0, k)),        # b1 chunk
                pl.BlockSpec((tk, dm_pad), lambda i, k: (k, 0)),   # W2 chunk
                pl.BlockSpec((1, dm_pad), lambda i, k: (0, 0)),    # b2 (resident)
            ],
            out_specs=pl.BlockSpec((tm, dm_pad), lambda i, k: (i, 0)),
            scratch_shapes=[pltpu.VMEM((tm, dm_pad), jnp.float32)],
        ),
        compiler_params=pltpu.CompilerParams(
            dimension_semantics=("parallel", "arbitrary"),  # megacore shards row tiles
            vmem_limit_bytes=int(budget),
        ),
    )(x2p, w1p, b1p, w2p, b2p)

    out = out[:m_rows, :d_model]
    return out.reshape(*lead_shape, d_model)


if __name__ == "__main__":
    # Small shapes consistent with the module: batch=2, seq=8, d_model=32, d_ff=64.
    batch, seq_len, d_model, d_ff = 2, 8, 32, 64

    key = jax.random.PRNGKey(0)
    kx, k1, k2, k3, k4 = jax.random.split(key, 5)
    x = jax.random.normal(kx, (batch, seq_len, d_model), dtype=jnp.float32)
    w1 = jax.random.normal(k1, (d_model, d_ff), dtype=jnp.float32) / math.sqrt(d_model)
    b1 = 0.01 * jax.random.normal(k2, (d_ff,), dtype=jnp.float32)
    w2 = jax.random.normal(k3, (d_ff, d_model), dtype=jnp.float32) / math.sqrt(d_ff)
    b2 = 0.01 * jax.random.normal(k4, (d_model,), dtype=jnp.float32)

    ref = jnp.maximum(x @ w1 + b1, 0.0) @ w2 + b2

    # Default fast path: bf16 MXU feeds, f32 accumulation.
    out = jax.block_until_ready(position_wise_feed_forward(x, w1, b1, w2, b2))
    assert out.shape == x.shape and out.dtype == x.dtype
    assert jnp.allclose(out, ref, atol=3e-2, rtol=3e-2), float(jnp.max(jnp.abs(out - ref)))

    # Explicit f32 MXU path.
    out32 = jax.block_until_ready(
        position_wise_feed_forward(x, w1, b1, w2, b2, mxu_dtype=jnp.float32))
    assert jnp.allclose(out32, ref, atol=2e-2, rtol=2e-2), float(jnp.max(jnp.abs(out32 - ref)))

    # Exercise the d_ff reduction axis (n_k > 1) and a ragged row count.
    seq2, d_ff2 = 7, 256
    kx2, k5, k6, k7, k8 = jax.random.split(jax.random.PRNGKey(1), 5)
    x_b = jax.random.normal(kx2, (batch, seq2, d_model), dtype=jnp.float32)
    w1_b = jax.random.normal(k5, (d_model, d_ff2), dtype=jnp.float32) / math.sqrt(d_model)
    b1_b = 0.01 * jax.random.normal(k6, (d_ff2,), dtype=jnp.float32)
    w2_b = jax.random.normal(k7, (d_ff2, d_model), dtype=jnp.float32) / math.sqrt(d_ff2)
    b2_b = 0.01 * jax.random.normal(k8, (d_model,), dtype=jnp.float32)
    ref_b = jnp.maximum(x_b @ w1_b + b1_b, 0.0) @ w2_b + b2_b

    out_b = jax.block_until_ready(
        position_wise_feed_forward(x_b, w1_b, b1_b, w2_b, b2_b, block_ff=128))
    assert out_b.shape == x_b.shape
    assert jnp.allclose(out_b, ref_b, atol=3e-2, rtol=3e-2), float(
        jnp.max(jnp.abs(out_b - ref_b)))

    print("KERNEL_OK")
</pallas_src>

<mosaic_0001>
module attributes {stable_mosaic.version = 11 : i64} {
  func.func @_ffn_kernel(%arg0: i32, %arg1: i32, %arg2: memref<16x128xf32, #tpu.memory_space<vmem>>, %arg3: memref<128x128xf32, #tpu.memory_space<vmem>>, %arg4: memref<1x128xf32, #tpu.memory_space<vmem>>, %arg5: memref<128x128xf32, #tpu.memory_space<vmem>>, %arg6: memref<1x128xf32, #tpu.memory_space<vmem>>, %arg7: memref<16x128xf32, #tpu.memory_space<vmem>>, %arg8: memref<16x128xf32, #tpu.memory_space<vmem>>) attributes {dimension_semantics = [#tpu.dimension_semantics<parallel>, #tpu.dimension_semantics<arbitrary>], iteration_bounds = array<i64: 1, 1>, scalar_prefetch = 0 : i64, scratch_operands = 1 : i64, tpu.core_type = #tpu.core_type<tc>, window_params = [{transform_indices = @transform_0, window_bounds = array<i64: 16, 128>}, {transform_indices = @transform_1, window_bounds = array<i64: 128, 128>}, {transform_indices = @transform_2, window_bounds = array<i64: 1, 128>}, {transform_indices = @transform_3, window_bounds = array<i64: 128, 128>}, {pipeline_mode = #tpu.pipeline_mode<synchronous>, transform_indices = @transform_4, window_bounds = array<i64: 1, 128>}, {transform_indices = @transform_5, window_bounds = array<i64: 16, 128>}]} {
    %c0_i32 = arith.constant 0 : i32
    %0 = arith.cmpi eq, %arg1, %c0_i32 : i32
    %1 = arith.extui %0 : i1 to i32
    %c0_i32_0 = arith.constant 0 : i32
    %2 = arith.cmpi ne, %1, %c0_i32_0 : i32
    scf.if %2 {
      %cst_16 = arith.constant 0.000000e+00 : f32
      %23 = vector.broadcast %cst_16 : f32 to vector<16x128xf32>
      %c0_17 = arith.constant 0 : index
      %c0_18 = arith.constant 0 : index
      %24 = vector.load %arg8[%c0_17, %c0_18] : memref<16x128xf32, #tpu.memory_space<vmem>>, vector<16x128xf32>
      tpu.vector_store %arg8[%c0_17, %c0_18], %23 {strides = array<i32>} : memref<16x128xf32, #tpu.memory_space<vmem>>, vector<16x128xf32>,
    } else {
    }
    %c0 = arith.constant 0 : index
    %c0_1 = arith.constant 0 : index
    %3 = vector.load %arg2[%c0, %c0_1] : memref<16x128xf32, #tpu.memory_space<vmem>>, vector<16x128xf32>
    %4 = arith.truncf %3 : vector<16x128xf32> to vector<16x128xbf16>
    %c0_2 = arith.constant 0 : index
    %c0_3 = arith.constant 0 : index
    %5 = vector.load %arg3[%c0_2, %c0_3] : memref<128x128xf32, #tpu.memory_space<vmem>>, vector<128x128xf32>
    %6 = arith.truncf %5 : vector<128x128xf32> to vector<128x128xbf16>
    %cst = arith.constant dense<0.000000e+00> : vector<16x128xf32>
    %7 = tpu.matmul %4, %6, %cst {dimension_numbers = #tpu.dot_dimension_numbers<[1], [0], [0], [1], [0, 0, 1, 1], [], []>} : vector<16x128xbf16>, vector<128x128xbf16>, vector<16x128xf32> -> vector<16x128xf32>
    %c0_4 = arith.constant 0 : index
    %c0_5 = arith.constant 0 : index
    %8 = vector.load %arg4[%c0_4, %c0_5] : memref<1x128xf32, #tpu.memory_space<vmem>>, vector<1x128xf32>
    %9 = vector.broadcast %8 : vector<1x128xf32> to vector<16x128xf32>
    %10 = arith.addf %7, %9 : vector<16x128xf32>
    %cst_6 = arith.constant 0.000000e+00 : f32
    %11 = vector.broadcast %cst_6 : f32 to vector<16x128xf32>
    %12 = arith.maximumf %10, %11 : vector<16x128xf32>
    %c0_7 = arith.constant 0 : index
    %c0_8 = arith.constant 0 : index
    %13 = vector.load %arg8[%c0_7, %c0_8] : memref<16x128xf32, #tpu.memory_space<vmem>>, vector<16x128xf32>
    %14 = arith.truncf %12 : vector<16x128xf32> to vector<16x128xbf16>
    %c0_9 = arith.constant 0 : index
    %c0_10 = arith.constant 0 : index
    %15 = vector.load %arg5[%c0_9, %c0_10] : memref<128x128xf32, #tpu.memory_space<vmem>>, vector<128x128xf32>
    %16 = arith.truncf %15 : vector<128x128xf32> to vector<128x128xbf16>
    %cst_11 = arith.constant dense<0.000000e+00> : vector<16x128xf32>
    %17 = tpu.matmul %14, %16, %cst_11 {dimension_numbers = #tpu.dot_dimension_numbers<[1], [0], [0], [1], [0, 0, 1, 1], [], []>} : vector<16x128xbf16>, vector<128x128xbf16>, vector<16x128xf32> -> vector<16x128xf32>
    %18 = arith.addf %13, %17 : vector<16x128xf32>
    %c0_12 = arith.constant 0 : index
    %c0_13 = arith.constant 0 : index
    %19 = vector.load %arg8[%c0_12, %c0_13] : memref<16x128xf32, #tpu.memory_space<vmem>>, vector<16x128xf32>
    tpu.vector_store %arg8[%c0_12, %c0_13], %18 {strides = array<i32>} : memref<16x128xf32, #tpu.memory_space<vmem>>, vector<16x128xf32>,
    %c0_i32_14 = arith.constant 0 : i32
    %20 = arith.cmpi eq, %arg1, %c0_i32_14 : i32
    %21 = arith.extui %20 : i1 to i32
    %c0_i32_15 = arith.constant 0 : i32
    %22 = arith.cmpi ne, %21, %c0_i32_15 : i32
    scf.if %22 {
      %c0_16 = arith.constant 0 : index
      %c0_17 = arith.constant 0 : index
      %23 = vector.load %arg8[%c0_16, %c0_17] : memref<16x128xf32, #tpu.memory_space<vmem>>, vector<16x128xf32>
      %c0_18 = arith.constant 0 : index
      %c0_19 = arith.constant 0 : index
      %24 = vector.load %arg6[%c0_18, %c0_19] : memref<1x128xf32, #tpu.memory_space<vmem>>, vector<1x128xf32>
      %25 = vector.broadcast %24 : vector<1x128xf32> to vector<16x128xf32>
      %26 = arith.addf %23, %25 : vector<16x128xf32>
      %c0_20 = arith.constant 0 : index
      %c0_21 = arith.constant 0 : index
      %27 = vector.load %arg7[%c0_20, %c0_21] : memref<16x128xf32, #tpu.memory_space<vmem>>, vector<16x128xf32>
      tpu.vector_store %arg7[%c0_20, %c0_21], %26 {strides = array<i32>} : memref<16x128xf32, #tpu.memory_space<vmem>>, vector<16x128xf32>,
    } else {
    }
    return
  }
  func.func @transform_0(%arg0: i32, %arg1: i32) -> (i32, i32) {
    %c0_i32 = arith.constant 0 : i32
    %c0_i32_0 = arith.constant 0 : i32
    return %arg0, %c0_i32 : i32, i32
  }
  func.func @transform_1(%arg0: i32, %arg1: i32) -> (i32, i32) {
    %c0_i32 = arith.constant 0 : i32
    %c0_i32_0 = arith.constant 0 : i32
    return %c0_i32, %arg1 : i32, i32
  }
  func.func @transform_2(%arg0: i32, %arg1: i32) -> (i32, i32) {
    %c0_i32 = arith.constant 0 : i32
    %c0_i32_0 = arith.constant 0 : i32
    return %c0_i32, %arg1 : i32, i32
  }
  func.func @transform_3(%arg0: i32, %arg1: i32) -> (i32, i32) {
    %c0_i32 = arith.constant 0 : i32
    %c0_i32_0 = arith.constant 0 : i32
    return %arg1, %c0_i32 : i32, i32
  }
  func.func @transform_4(%arg0: i32, %arg1: i32) -> (i32, i32) {
    %c0_i32 = arith.constant 0 : i32
    %c0_i32_0 = arith.constant 0 : i32
    %c0_i32_1 = arith.constant 0 : i32
    return %c0_i32, %c0_i32_0 : i32, i32
  }
  func.func @transform_5(%arg0: i32, %arg1: i32) -> (i32, i32) {
    %c0_i32 = arith.constant 0 : i32
    %c0_i32_0 = arith.constant 0 : i32
    return %arg0, %c0_i32 : i32, i32
  }
}

</mosaic_0001>

<llo_original>
// kernel: tpu_custom_call.1
$region0: #{tpu_custom_call.1}
  #allocation0 [shape = 'u32[]', space=smem, size = 0x4, offset = 0x4, fixed_abs, tag = 'smem constant byte address 0x4 - core index']
  #allocation1 [shape = 'u32[72,128]{1,0:T(1,128)}', space=vmem, size = 0x9000, scoped, tag = 'internal scratch']
  #allocation2 [shape = 'f32[16,128]{1,0:T(8,128)}', space=vmem, size = 0x2000, scoped, tag = 'scratch operand']
  %s0 = inlined_call_operand.hbm [shape: f32[16,128], index: 0, kind: input, shape index: {}]
  %s1 = inlined_call_operand.hbm [shape: f32[128,128], index: 1, kind: input, shape index: {}]
  %s2 = inlined_call_operand.vmem [shape: f32[1,128], index: 2, kind: input, shape index: {}]
  %s3 = inlined_call_operand.hbm [shape: f32[128,128], index: 3, kind: input, shape index: {}]
  %s4 = inlined_call_operand.vmem [shape: f32[1,128], index: 4, kind: input, shape index: {}]
  %s5 = inlined_call_operand.hbm [shape: f32[16,128], index: 5, kind: output, shape index: {}]
  %s6 = sld [smem:[#allocation0]]
  $region50: #{tpu_custom_call.1} parent=0
    _
  %s8 = ssub.s32 1, %s6
  %s9 = scalar_select 0, %s8, %s6
  $region1: #{tpu_custom_call.1} parent=0
    #allocation3 [shape = 'u8[8192]{0}', space=vmem, size = 0x2000, scoped, tag = 'input window, operand 0, single buffered']
    #allocation4 [shape = 's32[1]{0}', space=sflag, size = 0x4, scoped, tag = 'scoped memory for tpu_custom_call.1']
    #allocation5 [shape = 's32[1]{0}', space=sflag, size = 0x4, scoped, tag = 'scoped memory for tpu_custom_call.1']
    #allocation6 [shape = 'u8[65536]{0}', space=vmem, size = 0x10000, scoped, tag = 'input window, operand 1, single buffered']
    #allocation7 [shape = 's32[1]{0}', space=sflag, size = 0x4, scoped, tag = 'scoped memory for tpu_custom_call.1']
    #allocation8 [shape = 'u8[65536]{0}', space=vmem, size = 0x10000, scoped, tag = 'input window, operand 3, single buffered']
    #allocation9 [shape = 'u8[8192]{0}', space=vmem, size = 0x2000, scoped, tag = 'output window, operand 0, single buffered']
    %10 = vsyncpa [#allocation4], 0
    %11 = vsyncpa [#allocation7], 0
    %12 = vsyncpa [#allocation5], 0
    // Predicated region
    $region2: #{tpu_custom_call.1} parent=1 // pred_check
      _
    $region3: #{tpu_custom_call.1} parent=1 // pred_check_branch
      %14 = sbr.rel (0) target = $region5
    $region4: #{tpu_custom_call.1} parent=1 // pred_region
      %16 = vsyncadd [#allocation4], 0
      %s17 = sshll.u32 %s0, 4
      %s18 = int_to_ptr.hbm [resolvable:$true] %s17
      %s19 = sshll.u32 [#allocation3], 4
      %s20 = int_to_ptr.vmem [resolvable:$true] %s19
      %25 = dma.hbm_to_vmem [thread:$0]  %s18, 256, %s20, [#allocation4], 128, 128, 8
    $region5: #{tpu_custom_call.1} parent=1 // pred_fallthru
      _
    // Predicated region
    $region6: #{tpu_custom_call.1} parent=1 // pred_check
      _
    $region7: #{tpu_custom_call.1} parent=1 // pred_check_branch
      %27 = sbr.rel (0) target = $region9
    $region8: #{tpu_custom_call.1} parent=1 // pred_region
      %29 = vsyncadd [#allocation7], 0
      %s30 = sshll.u32 %s1, 4
      %s31 = int_to_ptr.hbm [resolvable:$true] %s30
      %s32 = sshll.u32 [#allocation6], 4
      %s33 = int_to_ptr.vmem [resolvable:$true] %s32
      %38 = dma.hbm_to_vmem [thread:$0]  %s31, 2048, %s33, [#allocation7], 128, 128, 8
    $region9: #{tpu_custom_call.1} parent=1 // pred_fallthru
      _
    // Predicated region
    $region10: #{tpu_custom_call.1} parent=1 // pred_check
      _
    $region11: #{tpu_custom_call.1} parent=1 // pred_check_branch
      %40 = sbr.rel (0) target = $region13
    $region12: #{tpu_custom_call.1} parent=1 // pred_region
      _
    $region13: #{tpu_custom_call.1} parent=1 // pred_fallthru
      _
    // Predicated region
    $region14: #{tpu_custom_call.1} parent=1 // pred_check
      _
    $region15: #{tpu_custom_call.1} parent=1 // pred_check_branch
      %42 = sbr.rel (0) target = $region17
    $region16: #{tpu_custom_call.1} parent=1 // pred_region
      %44 = vsyncadd [#allocation7], 0
      %s45 = sshll.u32 %s3, 4
      %s46 = int_to_ptr.hbm [resolvable:$true] %s45
      %s47 = sshll.u32 [#allocation8], 4
      %s48 = int_to_ptr.vmem [resolvable:$true] %s47
      %53 = dma.hbm_to_vmem [thread:$0]  %s46, 2048, %s48, [#allocation7], 128, 128, 8
    $region17: #{tpu_custom_call.1} parent=1 // pred_fallthru
      _
    // Predicated region
    $region18: #{tpu_custom_call.1} parent=1 // pred_check
      _
    $region19: #{tpu_custom_call.1} parent=1 // pred_check_branch
      %55 = sbr.rel (0) target = $region21
    $region20: #{tpu_custom_call.1} parent=1 // pred_region
      _
    $region21: #{tpu_custom_call.1} parent=1 // pred_fallthru
      _
    // Predicated region
    $region22: #{tpu_custom_call.1} parent=1 // pred_check
      _
    $region23: #{tpu_custom_call.1} parent=1 // pred_check_branch
      %57 = sbr.rel (0) target = $region25
    $region24: #{tpu_custom_call.1} parent=1 // pred_region
      %59 = dma.done [#allocation4], 256
    $region25: #{tpu_custom_call.1} parent=1 // pred_fallthru
      _
    // Predicated region
    $region26: #{tpu_custom_call.1} parent=1 // pred_check
      _
    $region27: #{tpu_custom_call.1} parent=1 // pred_check_branch
      %61 = sbr.rel (0) target = $region29
    $region28: #{tpu_custom_call.1} parent=1 // pred_region
      %63 = dma.done [#allocation7], 2048
    $region29: #{tpu_custom_call.1} parent=1 // pred_fallthru
      _
    // Predicated region
    $region30: #{tpu_custom_call.1} parent=1 // pred_check
      _
    $region31: #{tpu_custom_call.1} parent=1 // pred_check_branch
      %65 = sbr.rel (0) target = $region33
    $region32: #{tpu_custom_call.1} parent=1 // pred_region
      %67 = dma.done [#allocation7], 2048
    $region33: #{tpu_custom_call.1} parent=1 // pred_fallthru
      _
    %p68 = scmp.eq.s32.totalorder 0, 0
    // Predicated region
    $region34: #{tpu_custom_call.1} parent=1 // pred_check
      %p69 = pneg %p68
    $region35: #{tpu_custom_call.1} parent=1 // pred_check_branch
      %71 = sbr.rel (%p69) target = $region37
    $region36: #{tpu_custom_call.1} parent=1 // pred_region
      %72 = vst [vmem:[#allocation2] sm:$0xff] 0.0
      %73 = vst [vmem:[#allocation2 + $0x8] sm:$0xff] 0.0
    $region37: #{tpu_custom_call.1} parent=1 // pred_fallthru
      _
    %v74 = vld [vmem:[#allocation3] sm:$0xff]
    %v75 = vld [vmem:[#allocation3 + $0x8] sm:$0xff]
    %v76 = vpack.c.bf16 %v75, %v74
    %v77 = vld [vmem:[#allocation6] sm:$0xff]
    %v78 = vld [vmem:[#allocation6 + $0x8] sm:$0xff]
    %v79 = vld [vmem:[#allocation6 + $0x10] sm:$0xff]
    %v80 = vld [vmem:[#allocation6 + $0x18] sm:$0xff]
    %v81 = vld [vmem:[#allocation6 + $0x20] sm:$0xff]
    %v82 = vld [vmem:[#allocation6 + $0x28] sm:$0xff]
    %v83 = vld [vmem:[#allocation6 + $0x30] sm:$0xff]
    %v84 = vld [vmem:[#allocation6 + $0x38] sm:$0xff]
    %v85 = vld [vmem:[#allocation6 + $0x40] sm:$0xff]
    %v86 = vld [vmem:[#allocation6 + $0x48] sm:$0xff]
    %v87 = vld [vmem:[#allocation6 + $0x50] sm:$0xff]
    %v88 = vld [vmem:[#allocation6 + $0x58] sm:$0xff]
    %v89 = vld [vmem:[#allocation6 + $0x60] sm:$0xff]
    %v90 = vld [vmem:[#allocation6 + $0x68] sm:$0xff]
    %v91 = vld [vmem:[#allocation6 + $0x70] sm:$0xff]
    %v92 = vld [vmem:[#allocation6 + $0x78] sm:$0xff]
    %v93 = vpack.c.bf16 %v78, %v77
    %v94 = vpack.c.bf16 %v80, %v79
    %v95 = vpack.c.bf16 %v82, %v81
    %v96 = vpack.c.bf16 %v84, %v83
    %v97 = vpack.c.bf16 %v86, %v85
    %v98 = vpack.c.bf16 %v88, %v87
    %v99 = vpack.c.bf16 %v90, %v89
    %v100 = vpack.c.bf16 %v92, %v91
    %v101 = vld [vmem:[%s2] sm:$0x1]
    %v103 = vperm.slane %v101, 0
    %105 = vmatpush.bf16.msra.mxu0 %v100
    %106 = vmatpush.bf16.msra.mxu0 %v99
    %107 = vmatpush.bf16.msra.mxu0 %v98
    %108 = vmatpush.bf16.msra.mxu0 %v97
    %109 = vmatpush.bf16.msra.mxu0 %v96
    %110 = vmatpush.bf16.msra.mxu0 %v95
    %111 = vmatpush.bf16.msra.mxu0 %v94
    %112 = vmatpush.bf16.msra.mxu0 %v93
    %113 = vmatmul.bf16.gmra.mxu0 %v76
    %v114 = vpop.f32.mrf.mxu0
    %v115 = vadd.f32 %v103, %v114
    %v116 = vpop.f32.mrf.mxu0
    %v117 = vadd.f32 %v103, %v116
    %118 = vdwg.mxu0
    %v119 = vmax.f32 %v115, 0.0
    %v120 = vmax.f32 %v117, 0.0
    %v121 = vld [vmem:[#allocation2] sm:$0xff]
    %v122 = vld [vmem:[#allocation2 + $0x8] sm:$0xff]
    %v123 = vpack.c.bf16 %v120, %v119
    %v124 = vld [vmem:[#allocation8] sm:$0xff]
    %v125 = vld [vmem:[#allocation8 + $0x8] sm:$0xff]
    %v126 = vld [vmem:[#allocation8 + $0x10] sm:$0xff]
    %v127 = vld [vmem:[#allocation8 + $0x18] sm:$0xff]
    %v128 = vld [vmem:[#allocation8 + $0x20] sm:$0xff]
    %v129 = vld [vmem:[#allocation8 + $0x28] sm:$0xff]
    %v130 = vld [vmem:[#allocation8 + $0x30] sm:$0xff]
    %v131 = vld [vmem:[#allocation8 + $0x38] sm:$0xff]
    %v132 = vld [vmem:[#allocation8 + $0x40] sm:$0xff]
    %v133 = vld [vmem:[#allocation8 + $0x48] sm:$0xff]
    %v134 = vld [vmem:[#allocation8 + $0x50] sm:$0xff]
    %v135 = vld [vmem:[#allocation8 + $0x58] sm:$0xff]
    %v136 = vld [vmem:[#allocation8 + $0x60] sm:$0xff]
    %v137 = vld [vmem:[#allocation8 + $0x68] sm:$0xff]
    %v138 = vld [vmem:[#allocation8 + $0x70] sm:$0xff]
    %v139 = vld [vmem:[#allocation8 + $0x78] sm:$0xff]
    %v140 = vpack.c.bf16 %v125, %v124
    %v141 = vpack.c.bf16 %v127, %v126
    %v142 = vpack.c.bf16 %v129, %v128
    %v143 = vpack.c.bf16 %v131, %v130
    %v144 = vpack.c.bf16 %v133, %v132
    %v145 = vpack.c.bf16 %v135, %v134
    %v146 = vpack.c.bf16 %v137, %v136
    %v147 = vpack.c.bf16 %v139, %v138
    %148 = vmatpush.bf16.msra.mxu0 %v147
    %149 = vmatpush.bf16.msra.mxu0 %v146
    %150 = vmatpush.bf16.msra.mxu0 %v145
    %151 = vmatpush.bf16.msra.mxu0 %v144
    %152 = vmatpush.bf16.msra.mxu0 %v143
    %153 = vmatpush.bf16.msra.mxu0 %v142
    %154 = vmatpush.bf16.msra.mxu0 %v141
    %155 = vmatpush.bf16.msra.mxu0 %v140
    %156 = vmatmul.bf16.gmra.mxu0 %v123
    %v157 = vpop.f32.mrf.mxu0
    %v158 = vadd.f32 0.0, %v157
    %v159 = vpop.f32.mrf.mxu0
    %v160 = vadd.f32 0.0, %v159
    %161 = vdwg.mxu0
    %v162 = vadd.f32 %v121, %v158
    %v163 = vadd.f32 %v122, %v160
    %164 = vst [vmem:[#allocation2] sm:$0xff] %v162
    %165 = vst [vmem:[#allocation2 + $0x8] sm:$0xff] %v163
    // Predicated region
    $region38: #{tpu_custom_call.1} parent=1 // pred_check
      %p166 = pneg %p68
    $region39: #{tpu_custom_call.1} parent=1 // pred_check_branch
      %168 = sbr.rel (%p166) target = $region41
    $region40: #{tpu_custom_call.1} parent=1 // pred_region
      %v169 = vld [vmem:[#allocation2] sm:$0xff]
      %v170 = vld [vmem:[#allocation2 + $0x8] sm:$0xff]
      %v171 = vld [vmem:[%s4] sm:$0x1]
      %v173 = vperm.slane %v171, 0
      %v175 = vadd.f32 %v169, %v173
      %v176 = vadd.f32 %v170, %v173
      %177 = vst [vmem:[#allocation9] sm:$0xff] %v175
      %178 = vst [vmem:[#allocation9 + $0x8] sm:$0xff] %v176
    $region41: #{tpu_custom_call.1} parent=1 // pred_fallthru
      _
    // Predicated region
    $region42: #{tpu_custom_call.1} parent=1 // pred_check
      _
    $region43: #{tpu_custom_call.1} parent=1 // pred_check_branch
      %180 = sbr.rel (0) target = $region45
    $region44: #{tpu_custom_call.1} parent=1 // pred_region
      %182 = vsyncadd [#allocation5], 0
      %s183 = sshll.u32 [#allocation9], 4
      %s184 = int_to_ptr.vmem [resolvable:$true] %s183
      %s185 = sshll.u32 %s5, 4
      %s186 = int_to_ptr.hbm [resolvable:$true] %s185
      %191 = dma.vmem_to_hbm [thread:$0]  %s184, 256, %s186, [#allocation5], 128, 128, 8
    $region45: #{tpu_custom_call.1} parent=1 // pred_fallthru
      _
    // Predicated region
    $region46: #{tpu_custom_call.1} parent=1 // pred_check
      _
    $region47: #{tpu_custom_call.1} parent=1 // pred_check_branch
      %193 = sbr.rel (0) target = $region49
    $region48: #{tpu_custom_call.1} parent=1 // pred_region
      %195 = dma.done [#allocation5], 256
    $region49: #{tpu_custom_call.1} parent=1 // pred_fallthru
      _
    %196 = vsyncpa [#allocation4], 1
    %197 = vsyncpa [#allocation7], 1
    %198 = vsyncpa [#allocation5], 1

</llo_original>
